<compile_context>
chip_gen: v5e
topology: v5e:2x2
jax: 0.10.0
libtpu: 0.0.40
codegen_flags: <defaults>
</compile_context>

<pallas_src>
import jax
import jax.numpy as jnp
from jax.experimental import pallas as pl
from jax.experimental.pallas import tpu as pltpu


# ---------------------------------------------------------------------------
# Pallas kernel: fused 1x1 conv (channel mix) over a spatial tile
# ---------------------------------------------------------------------------
def _fused_pointwise_kernel(w_ref, b_ref, x_ref, o_ref):
    """o[0, co, s] = sum_ci w[co, ci] * x[0, ci, s] + b[co]

    w_ref: (C_out, C_in) f32 in SMEM  (read as scalars -> VPU broadcast MACs)
    b_ref: (C_out, 1)    f32 in SMEM
    x_ref: (1, C_in,  TS) f32 VMEM block   (spatial on the lane axis)
    o_ref: (1, C_out, TS) f32 VMEM block
    """
    c_out, c_in = w_ref.shape
    ts = x_ref.shape[-1]

    # Load each input-channel row of the tile once; reuse across outputs.
    xin = [x_ref[0, ci:ci + 1, :].astype(jnp.float32) for ci in range(c_in)]

    rows = []
    for co in range(c_out):
        acc = jnp.full((1, ts), b_ref[co, 0], dtype=jnp.float32)
        for ci in range(c_in):
            acc = acc + w_ref[co, ci] * xin[ci]   # scalar * vector on the VPU
        rows.append(acc)

    # One dense, lane-wide store of the whole (C_out, TS) tile.
    o_ref[0] = jnp.concatenate(rows, axis=0).astype(o_ref.dtype)


def fused_pointwise_conv_2d(x_nchw, weight_2d, bias_1d, *, ts_target=2048):
    """Fused 1x1 Conv2d (PyTorch semantics), single HBM round trip.

    x_nchw    : (N, C_in, H, W) float32
    weight_2d : (C_out, C_in)   float32   (already-fused weight)
    bias_1d   : (C_out,)        float32   (already-fused bias)
    returns   : (N, C_out, H, W) float32
    """
    n, c_in, h, w = x_nchw.shape
    c_out = weight_2d.shape[0]
    hw = h * w

    # Free reshape (contiguous NCHW): spatial goes on the lane axis.
    x3 = x_nchw.reshape(n, c_in, hw)

    # Spatial tile: multiple of 128 lanes, large enough to amortize the
    # per-grid-step overhead; if H*W is not lane-aligned, the block simply
    # spans the full dim (allowed by the layout rules) — no jnp.pad needed.
    if hw % 128 == 0:
        ts = min(ts_target, hw)
    else:
        ts = hw

    grid = (n, pl.cdiv(hw, ts))

    w2 = weight_2d.astype(jnp.float32)                 # (C_out, C_in)
    b2 = bias_1d.reshape(c_out, 1).astype(jnp.float32)  # (C_out, 1)

    out3 = pl.pallas_call(
        _fused_pointwise_kernel,
        out_shape=jax.ShapeDtypeStruct((n, c_out, hw), jnp.float32),
        grid_spec=pltpu.PrefetchScalarGridSpec(
            num_scalar_prefetch=0,
            grid=grid,
            in_specs=[
                # Tiny params live in SMEM: no per-step weight/bias DMAs.
                pl.BlockSpec(memory_space=pltpu.MemorySpace.SMEM),
                pl.BlockSpec(memory_space=pltpu.MemorySpace.SMEM),
                pl.BlockSpec((1, c_in, ts), lambda i, j: (i, 0, j)),
            ],
            out_specs=pl.BlockSpec((1, c_out, ts), lambda i, j: (i, 0, j)),
        ),
        compiler_params=pltpu.CompilerParams(
            dimension_semantics=("parallel", "parallel")),
    )(w2, b2, x3)

    return out3.reshape(n, c_out, h, w)


# ---------------------------------------------------------------------------
# `Custom` forward
# ---------------------------------------------------------------------------
def make_params(in_channels, classes, key):
    k1, k2, k3, k4 = jax.random.split(key, 4)
    # input_layer: Conv2d(in_channels -> 3, kernel_size=1)
    w_in = jax.random.normal(k1, (3, in_channels, 1, 1), jnp.float32) * 0.1
    b_in = jax.random.normal(k2, (3,), jnp.float32) * 0.01
    # UnetPlusPlus segmentation head: 1x1 conv -> `classes` channels.
    # Modeled directly on the 3-channel tensor (see TODO at top of file).
    w_seg = jax.random.normal(k3, (classes, 3, 1, 1), jnp.float32) * 0.1
    b_seg = jax.random.normal(k4, (classes,), jnp.float32) * 0.01
    return dict(w_in=w_in, b_in=b_in, w_seg=w_seg, b_seg=b_seg)


@jax.jit
def custom_forward(x, params):
    c_in = params["w_in"].shape[1]
    classes = params["w_seg"].shape[0]

    w_in2 = params["w_in"].reshape(3, c_in)          # (3, C_in)
    w_seg2 = params["w_seg"].reshape(classes, 3)     # (classes, 3)

    # Algebraic fusion of the two back-to-back 1x1 convs (both linear):
    #   y = W_seg (W_in x + b_in) + b_seg = (W_seg W_in) x + (W_seg b_in + b_seg)
    w_fused = w_seg2 @ w_in2                         # (classes, C_in)
    b_fused = w_seg2 @ params["b_in"] + params["b_seg"]

    return fused_pointwise_conv_2d(x, w_fused, b_fused)


if __name__ == "__main__":
    key = jax.random.PRNGKey(0)
    kx, kp = jax.random.split(key)

    batch, in_channels, H, W = 2, 4, 16, 16
    classes = 3

    x = jax.random.normal(kx, (batch, in_channels, H, W), jnp.float32)
    params = make_params(in_channels, classes, kp)

    out = custom_forward(x, params)
    out = jax.block_until_ready(out)
    assert out.shape == (batch, classes, H, W), out.shape

    # Sanity check of the fused Pallas kernel against plain JAX (two convs).
    ref = jnp.einsum("nchw,oc->nohw",
                     x, params["w_in"].reshape(3, in_channels)) \
          + params["b_in"].reshape(1, 3, 1, 1)
    ref = jnp.einsum("nchw,oc->nohw",
                     ref, params["w_seg"].reshape(classes, 3)) \
          + params["b_seg"].reshape(1, classes, 1, 1)
    assert jnp.allclose(out, ref, atol=1e-4, rtol=1e-4), \
        float(jnp.max(jnp.abs(out - ref)))

    print("KERNEL_OK")
</pallas_src>

<mosaic_0001>
module attributes {stable_mosaic.version = 11 : i64} {
  func.func @_fused_pointwise_kernel(%arg0: i32, %arg1: i32, %arg2: memref<3x4xf32, #tpu.memory_space<smem>>, %arg3: memref<3x1xf32, #tpu.memory_space<smem>>, %arg4: memref<1x4x256xf32, #tpu.memory_space<vmem>>, %arg5: memref<1x3x256xf32, #tpu.memory_space<vmem>>) attributes {dimension_semantics = [#tpu.dimension_semantics<parallel>, #tpu.dimension_semantics<parallel>], iteration_bounds = array<i64: 2, 1>, scalar_prefetch = 0 : i64, scratch_operands = 0 : i64, tpu.core_type = #tpu.core_type<tc>, window_params = [{transform_indices = @transform_0, window_bounds = array<i64: 3, 4>}, {transform_indices = @transform_1, window_bounds = array<i64: 3, 1>}, {transform_indices = @transform_2, window_bounds = array<i64: 1, 4, 256>}, {transform_indices = @transform_3, window_bounds = array<i64: 1, 3, 256>}]} {
    %c0 = arith.constant 0 : index
    %c0_0 = arith.constant 0 : index
    %c0_1 = arith.constant 0 : index
    %0 = vector.load %arg4[%c0, %c0_0, %c0_1] : memref<1x4x256xf32, #tpu.memory_space<vmem>>, vector<1x1x256xf32>
    %1 = vector.shape_cast %0 : vector<1x1x256xf32> to vector<1x256xf32>
    %c0_2 = arith.constant 0 : index
    %c1 = arith.constant 1 : index
    %c0_3 = arith.constant 0 : index
    %2 = vector.load %arg4[%c0_2, %c1, %c0_3] : memref<1x4x256xf32, #tpu.memory_space<vmem>>, vector<1x1x256xf32>
    %3 = vector.shape_cast %2 : vector<1x1x256xf32> to vector<1x256xf32>
    %c0_4 = arith.constant 0 : index
    %c2 = arith.constant 2 : index
    %c0_5 = arith.constant 0 : index
    %4 = vector.load %arg4[%c0_4, %c2, %c0_5] : memref<1x4x256xf32, #tpu.memory_space<vmem>>, vector<1x1x256xf32>
    %5 = vector.shape_cast %4 : vector<1x1x256xf32> to vector<1x256xf32>
    %c0_6 = arith.constant 0 : index
    %c3 = arith.constant 3 : index
    %c0_7 = arith.constant 0 : index
    %6 = vector.load %arg4[%c0_6, %c3, %c0_7] : memref<1x4x256xf32, #tpu.memory_space<vmem>>, vector<1x1x256xf32>
    %7 = vector.shape_cast %6 : vector<1x1x256xf32> to vector<1x256xf32>
    %c0_8 = arith.constant 0 : index
    %c0_9 = arith.constant 0 : index
    %8 = memref.load %arg3[%c0_8, %c0_9] : memref<3x1xf32, #tpu.memory_space<smem>>
    %9 = vector.broadcast %8 : f32 to vector<1x256xf32>
    %c0_10 = arith.constant 0 : index
    %c0_11 = arith.constant 0 : index
    %10 = memref.load %arg2[%c0_10, %c0_11] : memref<3x4xf32, #tpu.memory_space<smem>>
    %11 = vector.broadcast %10 : f32 to vector<1x256xf32>
    %12 = arith.mulf %11, %1 : vector<1x256xf32>
    %13 = arith.addf %9, %12 : vector<1x256xf32>
    %c0_12 = arith.constant 0 : index
    %c1_13 = arith.constant 1 : index
    %14 = memref.load %arg2[%c0_12, %c1_13] : memref<3x4xf32, #tpu.memory_space<smem>>
    %15 = vector.broadcast %14 : f32 to vector<1x256xf32>
    %16 = arith.mulf %15, %3 : vector<1x256xf32>
    %17 = arith.addf %13, %16 : vector<1x256xf32>
    %c0_14 = arith.constant 0 : index
    %c2_15 = arith.constant 2 : index
    %18 = memref.load %arg2[%c0_14, %c2_15] : memref<3x4xf32, #tpu.memory_space<smem>>
    %19 = vector.broadcast %18 : f32 to vector<1x256xf32>
    %20 = arith.mulf %19, %5 : vector<1x256xf32>
    %21 = arith.addf %17, %20 : vector<1x256xf32>
    %c0_16 = arith.constant 0 : index
    %c3_17 = arith.constant 3 : index
    %22 = memref.load %arg2[%c0_16, %c3_17] : memref<3x4xf32, #tpu.memory_space<smem>>
    %23 = vector.broadcast %22 : f32 to vector<1x256xf32>
    %24 = arith.mulf %23, %7 : vector<1x256xf32>
    %25 = arith.addf %21, %24 : vector<1x256xf32>
    %c1_18 = arith.constant 1 : index
    %c0_19 = arith.constant 0 : index
    %26 = memref.load %arg3[%c1_18, %c0_19] : memref<3x1xf32, #tpu.memory_space<smem>>
    %27 = vector.broadcast %26 : f32 to vector<1x256xf32>
    %c1_20 = arith.constant 1 : index
    %c0_21 = arith.constant 0 : index
    %28 = memref.load %arg2[%c1_20, %c0_21] : memref<3x4xf32, #tpu.memory_space<smem>>
    %29 = vector.broadcast %28 : f32 to vector<1x256xf32>
    %30 = arith.mulf %29, %1 : vector<1x256xf32>
    %31 = arith.addf %27, %30 : vector<1x256xf32>
    %c1_22 = arith.constant 1 : index
    %c1_23 = arith.constant 1 : index
    %32 = memref.load %arg2[%c1_22, %c1_23] : memref<3x4xf32, #tpu.memory_space<smem>>
    %33 = vector.broadcast %32 : f32 to vector<1x256xf32>
    %34 = arith.mulf %33, %3 : vector<1x256xf32>
    %35 = arith.addf %31, %34 : vector<1x256xf32>
    %c1_24 = arith.constant 1 : index
    %c2_25 = arith.constant 2 : index
    %36 = memref.load %arg2[%c1_24, %c2_25] : memref<3x4xf32, #tpu.memory_space<smem>>
    %37 = vector.broadcast %36 : f32 to vector<1x256xf32>
    %38 = arith.mulf %37, %5 : vector<1x256xf32>
    %39 = arith.addf %35, %38 : vector<1x256xf32>
    %c1_26 = arith.constant 1 : index
    %c3_27 = arith.constant 3 : index
    %40 = memref.load %arg2[%c1_26, %c3_27] : memref<3x4xf32, #tpu.memory_space<smem>>
    %41 = vector.broadcast %40 : f32 to vector<1x256xf32>
    %42 = arith.mulf %41, %7 : vector<1x256xf32>
    %43 = arith.addf %39, %42 : vector<1x256xf32>
    %c2_28 = arith.constant 2 : index
    %c0_29 = arith.constant 0 : index
    %44 = memref.load %arg3[%c2_28, %c0_29] : memref<3x1xf32, #tpu.memory_space<smem>>
    %45 = vector.broadcast %44 : f32 to vector<1x256xf32>
    %c2_30 = arith.constant 2 : index
    %c0_31 = arith.constant 0 : index
    %46 = memref.load %arg2[%c2_30, %c0_31] : memref<3x4xf32, #tpu.memory_space<smem>>
    %47 = vector.broadcast %46 : f32 to vector<1x256xf32>
    %48 = arith.mulf %47, %1 : vector<1x256xf32>
    %49 = arith.addf %45, %48 : vector<1x256xf32>
    %c2_32 = arith.constant 2 : index
    %c1_33 = arith.constant 1 : index
    %50 = memref.load %arg2[%c2_32, %c1_33] : memref<3x4xf32, #tpu.memory_space<smem>>
    %51 = vector.broadcast %50 : f32 to vector<1x256xf32>
    %52 = arith.mulf %51, %3 : vector<1x256xf32>
    %53 = arith.addf %49, %52 : vector<1x256xf32>
    %c2_34 = arith.constant 2 : index
    %c2_35 = arith.constant 2 : index
    %54 = memref.load %arg2[%c2_34, %c2_35] : memref<3x4xf32, #tpu.memory_space<smem>>
    %55 = vector.broadcast %54 : f32 to vector<1x256xf32>
    %56 = arith.mulf %55, %5 : vector<1x256xf32>
    %57 = arith.addf %53, %56 : vector<1x256xf32>
    %c2_36 = arith.constant 2 : index
    %c3_37 = arith.constant 3 : index
    %58 = memref.load %arg2[%c2_36, %c3_37] : memref<3x4xf32, #tpu.memory_space<smem>>
    %59 = vector.broadcast %58 : f32 to vector<1x256xf32>
    %60 = arith.mulf %59, %7 : vector<1x256xf32>
    %61 = arith.addf %57, %60 : vector<1x256xf32>
    %62 = tpu.concatenate %25, %43, %61 in 0 : vector<1x256xf32>, vector<1x256xf32>, vector<1x256xf32> -> vector<3x256xf32>
    %c0_38 = arith.constant 0 : index
    %c0_39 = arith.constant 0 : index
    %c0_40 = arith.constant 0 : index
    %63 = vector.load %arg5[%c0_38, %c0_39, %c0_40] : memref<1x3x256xf32, #tpu.memory_space<vmem>>, vector<1x3x256xf32>
    %64 = vector.shape_cast %63 : vector<1x3x256xf32> to vector<3x256xf32>
    %65 = vector.shape_cast %62 : vector<3x256xf32> to vector<1x3x256xf32>
    tpu.vector_store %arg5[%c0_38, %c0_39, %c0_40], %65 {strides = array<i32>} : memref<1x3x256xf32, #tpu.memory_space<vmem>>, vector<1x3x256xf32>,
    return
  }
  func.func @transform_0(%arg0: i32, %arg1: i32) -> (i32, i32) {
    %c0_i32 = arith.constant 0 : i32
    %c0_i32_0 = arith.constant 0 : i32
    %c0_i32_1 = arith.constant 0 : i32
    return %c0_i32, %c0_i32_0 : i32, i32
  }
  func.func @transform_1(%arg0: i32, %arg1: i32) -> (i32, i32) {
    %c0_i32 = arith.constant 0 : i32
    %c0_i32_0 = arith.constant 0 : i32
    %c0_i32_1 = arith.constant 0 : i32
    return %c0_i32, %c0_i32_0 : i32, i32
  }
  func.func @transform_2(%arg0: i32, %arg1: i32) -> (i32, i32, i32) {
    %c0_i32 = arith.constant 0 : i32
    %c0_i32_0 = arith.constant 0 : i32
    return %arg0, %c0_i32, %arg1 : i32, i32, i32
  }
  func.func @transform_3(%arg0: i32, %arg1: i32) -> (i32, i32, i32) {
    %c0_i32 = arith.constant 0 : i32
    %c0_i32_0 = arith.constant 0 : i32
    return %arg0, %c0_i32, %arg1 : i32, i32, i32
  }
}

</mosaic_0001>

<llo_original>
// kernel: custom_forward.1
$region0: #{custom_forward.1}
  #allocation0 [shape = 'u32[]', space=smem, size = 0x4, offset = 0x4, fixed_abs, tag = 'smem constant byte address 0x4 - core index']
  #allocation1 [shape = 'u32[72,128]{1,0:T(1,128)}', space=vmem, size = 0x9000, scoped, tag = 'internal scratch']
  %s0 = inlined_call_operand.vmem [shape: f32[3,4], index: 0, kind: input, shape index: {}]
  %s1 = inlined_call_operand.vmem [shape: f32[3,1], index: 1, kind: input, shape index: {}]
  %s2 = inlined_call_operand.vmem [shape: f32[2,4,256], index: 2, kind: input, shape index: {}]
  %s3 = inlined_call_operand.vmem [shape: f32[2,3,256], index: 3, kind: output, shape index: {}]
  %s4 = sld [smem:[#allocation0]]
  $region53: #{custom_forward.1} parent=0
    _
  %s6 = ssub.s32 1, %s4
  %s7 = scalar_select 0, %s6, %s4
  $region1: #{custom_forward.1} parent=0
    #allocation2 [shape = 'u8[2048]{0}', space=smem, size = 0x800, scoped, tag = 'input window, operand 0, single buffered']
    #allocation3 [shape = 's32[2]{0}', space=sflag, size = 0x8, scoped, tag = 'scoped memory for custom_forward.1']
    #allocation4 [shape = 'u8[2048]{0}', space=smem, size = 0x800, scoped, tag = 'input window, operand 1, single buffered']
    #allocation5 [shape = 's32[1]{0}', space=sflag, size = 0x4, scoped, tag = 'scoped memory for custom_forward.1']
    %8 = vsyncpa [#allocation3], 0
    %9 = vsyncpa [#allocation5], 0
    loop: start=0, step=1, limit=4
    $region2: #{custom_forward.1} parent=1 // loop_pre_header
      _
    $region3: #{custom_forward.1} parent=1 // loop_header
      %s11 = sphi 0, %s15
      %p12 = scmp.ge.s32.totalorder %s11, 4
      %s18 = sphi 0, %s30
      %s19 = sphi 0, %s26
      %s20 = sphi 0, %s18
      %s21 = sphi 0, %s19
      %s22 = sphi 0, %s20
      %s23 = sphi 0, %s21
      %s31 = sphi 0, %s31
      %s33 = sphi 0, %s31
      %s34 = sphi 0, %s33
      %s48 = sphi 0, %s34
      %s52 = sphi 0, %s52
      %s54 = sphi 0, %s52
      %s55 = sphi 0, %s54
      %s69 = sphi 0, %s55
      %s77 = sphi 0, %s79
      %s80 = sphi 0, %s77
      %s81 = sphi 0, %s80
      %s97 = sphi 0, %s81
      %s105 = sphi 0, %s107
      %s108 = sphi 0, %s105
      %s109 = sphi 0, %s108
      %s125 = sphi 0, %s109
    $region4: #{custom_forward.1} parent=1 // loop_header_branch
      %14 = sbr.rel (%p12) target = $region8
    $region5: #{custom_forward.1} parent=1 // loop_body
      %s16 = ssub.s32 %s11, 1
      %s17 = ssub.s32 %s11, 2
      %s24 = sadd.s32 1, %s19
      %p25 = scmp.ge.s32.totalorder %s24, 1
      %s26 = scalar_select %p25, 0, %s24
      %s27 = sadd.s32 1, %s18
      %s28 = scalar_select %p25, %s27, %s18
      %p29 = scmp.ge.s32.totalorder %s28, 2
      %s30 = scalar_select %p29, 0, %s28
      %s32 = sadd.s32 %s31, 1
      %p35 = scmp.eq.s32.totalorder %s11, 1
      %p36 = scmp.ne.s32.totalorder %s31, %s33
      %p37 = scmp.eq.s32.totalorder %s11, 0
      %p38 = por %p36, %p37
      %p39 = scmp.ne.s32.totalorder %s31, %s33
      %p40 = scmp.eq.s32.totalorder %s16, 1
      %p41 = por %p39, %p40
      %p42 = scmp.ne.s32.totalorder %s33, %s34
      %p43 = scmp.eq.s32.totalorder %s16, 0
      %p44 = por %p42, %p43
      %p45 = scmp.ne.s32.totalorder %s33, %s34
      %p46 = scmp.eq.s32.totalorder %s17, 1
      %p47 = por %p45, %p46
      %p49 = scmp.ne.s32.totalorder %s34, %s48
      %p50 = scmp.eq.s32.totalorder %s17, 0
      %p51 = por %p49, %p50
      %s53 = sadd.s32 %s52, 1
      %p56 = scmp.eq.s32.totalorder %s11, 1
      %p57 = scmp.ne.s32.totalorder %s52, %s54
      %p58 = scmp.eq.s32.totalorder %s11, 0
      %p59 = por %p57, %p58
      %p60 = scmp.ne.s32.totalorder %s52, %s54
      %p61 = scmp.eq.s32.totalorder %s16, 1
      %p62 = por %p60, %p61
      %p63 = scmp.ne.s32.totalorder %s54, %s55
      %p64 = scmp.eq.s32.totalorder %s16, 0
      %p65 = por %p63, %p64
      %p66 = scmp.ne.s32.totalorder %s54, %s55
      %p67 = scmp.eq.s32.totalorder %s17, 1
      %p68 = por %p66, %p67
      %p70 = scmp.ne.s32.totalorder %s55, %s69
      %p71 = scmp.eq.s32.totalorder %s17, 0
      %p72 = por %p70, %p71
      %s73 = ssub.s32 %s18, %s30
      %s74 = ssub.s32 %s19, %s26
      %s75 = sor.u32 %s73, %s74
      %p76 = scmp.eq.s32.totalorder %s75, 0
      %s78 = sadd.s32 %s77, 1
      %s79 = scalar_select %p76, %s77, %s78
      %p82 = pneg %p76
      %p83 = scmp.eq.s32.totalorder %s11, 1
      %p84 = por %p82, %p83
      %p85 = scmp.ne.s32.totalorder %s77, %s80
      %p86 = scmp.eq.s32.totalorder %s11, 0
      %p87 = por %p85, %p86
      %p88 = scmp.ne.s32.totalorder %s77, %s80
      %p89 = scmp.eq.s32.totalorder %s16, 1
      %p90 = por %p88, %p89
      %p91 = scmp.ne.s32.totalorder %s80, %s81
      %p92 = scmp.eq.s32.totalorder %s16, 0
      %p93 = por %p91, %p92
      %p94 = scmp.ne.s32.totalorder %s80, %s81
      %p95 = scmp.eq.s32.totalorder %s17, 1
      %p96 = por %p94, %p95
      %p98 = scmp.ne.s32.totalorder %s81, %s97
      %p99 = scmp.eq.s32.totalorder %s17, 0
      %p100 = por %p98, %p99
      %s101 = ssub.s32 %s18, %s30
      %s102 = ssub.s32 %s19, %s26
      %s103 = sor.u32 %s101, %s102
      %p104 = scmp.eq.s32.totalorder %s103, 0
      %s106 = sadd.s32 %s105, 1
      %s107 = scalar_select %p104, %s105, %s106
      %p110 = pneg %p104
      %p111 = scmp.eq.s32.totalorder %s11, 1
      %p112 = por %p110, %p111
      %p113 = scmp.ne.s32.totalorder %s105, %s108
      %p114 = scmp.eq.s32.totalorder %s11, 0
      %p115 = por %p113, %p114
      %p116 = scmp.ne.s32.totalorder %s105, %s108
      %p117 = scmp.eq.s32.totalorder %s16, 1
      %p118 = por %p116, %p117
      %p119 = scmp.ne.s32.totalorder %s108, %s109
      %p120 = scmp.eq.s32.totalorder %s16, 0
      %p121 = por %p119, %p120
      %p122 = scmp.ne.s32.totalorder %s108, %s109
      %p123 = scmp.eq.s32.totalorder %s17, 1
      %p124 = por %p122, %p123
      %p126 = scmp.ne.s32.totalorder %s109, %s125
      %p127 = scmp.eq.s32.totalorder %s17, 0
      %p128 = por %p126, %p127
      %p129 = scmp.le.s32.totalorder 1, %s11
      %p130 = scmp.lt.s32.totalorder %s11, 3
      %p131 = pnand %p129, %p130
      %p132 = pneg %p131
      // Predicated region
      $region9: #{custom_forward.1} parent=5 // pred_check
        _
      $region10: #{custom_forward.1} parent=5 // pred_check_branch
        %134 = sbr.rel (%p131) target = $region12
      $region11: #{custom_forward.1} parent=5 // pred_region
        %s135 = ssub.s32 %s11, 1
        // Predicated region
        $region13: #{custom_forward.1} parent=11 // pred_check
          %p136 = pneg %p44
        $region14: #{custom_forward.1} parent=11 // pred_check_branch
          %138 = sbr.rel (%p136) target = $region16
        $region15: #{custom_forward.1} parent=11 // pred_region
          %140 = vsyncadd [#allocation3], 0
          %s142 = sshll.u32 %s0, 4
          %s143 = int_to_ptr.vmem [resolvable:$true] %s142
          %145 = dma.vmem_to_smem %s143, 64, [#allocation2], [#allocation3]
        $region16: #{custom_forward.1} parent=11 // pred_fallthru
          _
        // Predicated region
        $region17: #{custom_forward.1} parent=11 // pred_check
          %p146 = pneg %p65
        $region18: #{custom_forward.1} parent=11 // pred_check_branch
          %148 = sbr.rel (%p146) target = $region20
        $region19: #{custom_forward.1} parent=11 // pred_region
          %150 = vsyncadd [#allocation5], 0
          %s152 = sshll.u32 %s1, 4
          %s153 = int_to_ptr.vmem [resolvable:$true] %s152
          %155 = dma.vmem_to_smem %s153, 64, [#allocation4], [#allocation5]
        $region20: #{custom_forward.1} parent=11 // pred_fallthru
          _
      $region12: #{custom_forward.1} parent=5 // pred_fallthru
        _
      %p156 = scmp.lt.s32.totalorder %s11, 2
      // Predicated region
      $region21: #{custom_forward.1} parent=5 // pred_check
        %p157 = pneg %p156
      $region22: #{custom_forward.1} parent=5 // pred_check_branch
        %159 = sbr.rel (%p157) target = $region24
      $region23: #{custom_forward.1} parent=5 // pred_region
        // Predicated region
        $region25: #{custom_forward.1} parent=23 // pred_check
          %p160 = pneg %p87
        $region26: #{custom_forward.1} parent=23 // pred_check_branch
          %162 = sbr.rel (%p160) target = $region28
        $region27: #{custom_forward.1} parent=23 // pred_region
          %s163 = smul.u32 2, %s19
          %p164 = scmp.lt.s32.totalorder %s18, 1
          %s165 = scalar_select %p164, %s18, 1
          %p166 = scmp.lt.s32.totalorder %s163, 1
          %s167 = scalar_select %p166, %s163, 1
          %s168 = smul.addr %s165, 2
          %s169 = sadd.s32 %s167, %s168
          %s170 = smul.addr %s169, 4
          %s171 = scalar_lea.vmem %s2, %s170
          %s172 = smul.u32 2, %s19
        $region28: #{custom_forward.1} parent=23 // pred_fallthru
          _
      $region24: #{custom_forward.1} parent=5 // pred_fallthru
        _
      %p173 = scmp.le.s32.totalorder 1, %s11
      %p174 = scmp.lt.s32.totalorder %s11, 3
      %p175 = pnand %p173, %p174
      %p176 = pneg %p175
      // Predicated region
      $region29: #{custom_forward.1} parent=5 // pred_check
        _
      $region30: #{custom_forward.1} parent=5 // pred_check_branch
        %178 = sbr.rel (%p175) target = $region32
      $region31: #{custom_forward.1} parent=5 // pred_region
        %s179 = ssub.s32 %s11, 1
        // Predicated region
        $region33: #{custom_forward.1} parent=31 // pred_check
          %p180 = pneg %p44
        $region34: #{custom_forward.1} parent=31 // pred_check_branch
          %182 = sbr.rel (%p180) target = $region36
        $region35: #{custom_forward.1} parent=31 // pred_region
          %184 = dma.done [#allocation3], 64
        $region36: #{custom_forward.1} parent=31 // pred_fallthru
          _
        // Predicated region
        $region37: #{custom_forward.1} parent=31 // pred_check
          %p185 = pneg %p65
        $region38: #{custom_forward.1} parent=31 // pred_check_branch
          %187 = sbr.rel (%p185) target = $region40
        $region39: #{custom_forward.1} parent=31 // pred_region
          %189 = dma.done [#allocation5], 64
        $region40: #{custom_forward.1} parent=31 // pred_fallthru
          _
        %190 = sfence
        %p191 = pneg %p44
        %p192 = pneg %p41
        %p193 = pneg %p65
        %p194 = pneg %p62
        %s195 = smul.u32 2, %s21
        %p196 = scmp.lt.s32.totalorder %s20, 1
        %s197 = scalar_select %p196, %s20, 1
        %p198 = scmp.lt.s32.totalorder %s195, 1
        %s199 = scalar_select %p198, %s195, 1
        %s200 = smul.addr %s197, 2
        %s201 = sadd.s32 %s199, %s200
        %s202 = smul.addr %s201, 4
        %s203 = scalar_lea.vmem %s2, %s202
        %p204 = pneg %p93
        %p205 = pneg %p90
        %p206 = pneg %p121
        %p207 = pneg %p118
        %s208 = smul.u32 2, %s21
        %p209 = scmp.lt.s32.totalorder %s20, 1
        %s210 = scalar_select %p209, %s20, 1
        %p211 = scmp.lt.s32.totalorder %s208, 1
        %s212 = scalar_select %p211, %s208, 1
        %s213 = smul.addr %s210, 2
        %s214 = sadd.s32 %s212, %s213
        %s215 = smul.addr %s214, 4
        %s216 = scalar_lea.vmem %s3, %s215
        %s217 = smul.u32 2, %s21
        %p218 = scmp.lt.s32.totalorder %s20, 1
        %s219 = scalar_select %p218, %s20, 1
        %p220 = scmp.lt.s32.totalorder %s217, 1
        %s221 = scalar_select %p220, %s217, 1
        %s222 = smul.addr %s219, 2
        %s223 = sadd.s32 %s221, %s222
        %s224 = smul.addr %s223, 4
        %s225 = scalar_lea.vmem %s2, %s224
        %s226 = smul.u32 2, %s21
        %s227 = smul.u32 2, %s21
        %p228 = scmp.lt.s32.totalorder %s20, 1
        %s229 = scalar_select %p228, %s20, 1
        %p230 = scmp.lt.s32.totalorder %s227, 1
        %s231 = scalar_select %p230, %s227, 1
        %s232 = smul.addr %s229, 2
        %s233 = sadd.s32 %s231, %s232
        %s234 = smul.addr %s233, 4
        %s235 = scalar_lea.vmem %s3, %s234
        %s236 = smul.u32 2, %s21
        %v237 = vld [vmem:[%s225] ss:$4 sm:$0x3]
        %s238 = scalar_lea.vmem %s225, 1
        %v239 = vld [vmem:[%s238] ss:$4 sm:$0x3]
        %s240 = scalar_lea.vmem %s225, 2
        %v241 = vld [vmem:[%s240] ss:$4 sm:$0x3]
        %s242 = scalar_lea.vmem %s225, 3
        %v243 = vld [vmem:[%s242] ss:$4 sm:$0x3]
        %s244 = sld [smem:[#allocation4]]
        %v245 = vstv %s244
        %s246 = sld [smem:[#allocation2]]
        %v247 = vstv %s246
        %v248 = vmul.f32 %v247, %v237
        %v249 = vadd.f32 %v245, %v248
        %s250 = sld [smem:[#allocation2 + $0x1]]
        %v251 = vstv %s250
        %v252 = vmul.f32 %v251, %v239
        %v253 = vadd.f32 %v249, %v252
        %s254 = sld [smem:[#allocation2 + $0x2]]
        %v255 = vstv %s254
        %v256 = vmul.f32 %v255, %v241
        %v257 = vadd.f32 %v253, %v256
        %s258 = sld [smem:[#allocation2 + $0x3]]
        %v259 = vstv %s258
        %v260 = vmul.f32 %v259, %v243
        %v261 = vadd.f32 %v257, %v260
        %s262 = sld [smem:[#allocation4 + $0x80]]
        %v263 = vstv %s262
        %s264 = sld [smem:[#allocation2 + $0x80]]
        %v265 = vstv %s264
        %v266 = vmul.f32 %v265, %v237
        %v267 = vadd.f32 %v263, %v266
        %s268 = sld [smem:[#allocation2 + $0x81]]
        %v269 = vstv %s268
        %v270 = vmul.f32 %v269, %v239
        %v271 = vadd.f32 %v267, %v270
        %s272 = sld [smem:[#allocation2 + $0x82]]
        %v273 = vstv %s272
        %v274 = vmul.f32 %v273, %v241
        %v275 = vadd.f32 %v271, %v274
        %s276 = sld [smem:[#allocation2 + $0x83]]
        %v277 = vstv %s276
        %v278 = vmul.f32 %v277, %v243
        %v279 = vadd.f32 %v275, %v278
        %s280 = sld [smem:[#allocation4 + $0x100]]
        %v281 = vstv %s280
        %s282 = sld [smem:[#allocation2 + $0x100]]
        %v283 = vstv %s282
        %v284 = vmul.f32 %v283, %v237
        %v285 = vadd.f32 %v281, %v284
        %s286 = sld [smem:[#allocation2 + $0x101]]
        %v287 = vstv %s286
        %v288 = vmul.f32 %v287, %v239
        %v289 = vadd.f32 %v285, %v288
        %s290 = sld [smem:[#allocation2 + $0x102]]
        %v291 = vstv %s290
        %v292 = vmul.f32 %v291, %v241
        %v293 = vadd.f32 %v289, %v292
        %s294 = sld [smem:[#allocation2 + $0x103]]
        %v295 = vstv %s294
        %v296 = vmul.f32 %v295, %v243
        %v297 = vadd.f32 %v293, %v296
        %v299 = vperm.slane %v261, 0
        %v300 = vperm.slane %v261, 1
        %v304 = vperm.slane %v279, 0
        %v305 = vperm.slane %v279, 1
        %v309 = vperm.slane %v297, 0
        %v310 = vperm.slane %v297, 1
        %vm313 = vcmask 1040384
        %v314 = vsel %vm313, %v299, %v304
        %v315 = vsel %vm313, %v300, %v305
        %vm316 = vcmask 1041408
        %v317 = vsel %vm316, %v314, %v309
        %v318 = vsel %vm316, %v315, %v310
        %v321 = vrot.slane %v318, 4
        %vm322 = vcmask 1043456
        %v323 = vsel %vm322, %v317, %v321
        %325 = vst [vmem:[%s235] sm:$0x77] %v323
        %s326 = smul.u32 2, %s21
        %p327 = scmp.lt.s32.totalorder %s20, 1
        %s328 = scalar_select %p327, %s20, 1
        %p329 = scmp.lt.s32.totalorder %s326, 1
        %s330 = scalar_select %p329, %s326, 1
        %s331 = smul.addr %s328, 2
        %s332 = sadd.s32 %s330, %s331
        %s333 = smul.addr %s332, 4
        %s334 = scalar_lea.vmem %s3, %s333
        // Predicated region
        $region41: #{custom_forward.1} parent=31 // pred_check
          %p335 = pneg %p118
        $region42: #{custom_forward.1} parent=31 // pred_check_branch
          %337 = sbr.rel (%p335) target = $region44
        $region43: #{custom_forward.1} parent=31 // pred_region
          %s338 = smul.u32 2, %s21
        $region44: #{custom_forward.1} parent=31 // pred_fallthru
          _
      $region32: #{custom_forward.1} parent=5 // pred_fallthru
        _
      %p339 = scmp.le.s32.totalorder 2, %s11
      // Predicated region
      $region45: #{custom_forward.1} parent=5 // pred_check
        %p340 = pneg %p339
      $region46: #{custom_forward.1} parent=5 // pred_check_branch
        %342 = sbr.rel (%p340) target = $region48
      $region47: #{custom_forward.1} parent=5 // pred_region
        %s343 = ssub.s32 %s11, 2
        // Predicated region
        $region49: #{custom_forward.1} parent=47 // pred_check
          %p344 = pneg %p124
        $region50: #{custom_forward.1} parent=47 // pred_check_branch
          %346 = sbr.rel (%p344) target = $region52
        $region51: #{custom_forward.1} parent=47 // pred_region
          %s347 = smul.u32 2, %s23
          %p348 = scmp.lt.s32.totalorder %s22, 1
          %s349 = scalar_select %p348, %s22, 1
          %p350 = scmp.lt.s32.totalorder %s347, 1
          %s351 = scalar_select %p350, %s347, 1
          %s352 = smul.addr %s349, 2
          %s353 = sadd.s32 %s351, %s352
          %s354 = smul.addr %s353, 4
          %s355 = scalar_lea.vmem %s3, %s354
        $region52: #{custom_forward.1} parent=47 // pred_fallthru
          _
      $region48: #{custom_forward.1} parent=5 // pred_fallthru
        _
    $region6: #{custom_forward.1} parent=1 // loop_footer
      %s15 = sadd.s32 1, %s11
    $region7: #{custom_forward.1} parent=1 // loop_footer_branch
      %10 = sbr.rel target = $region3
    $region8: #{custom_forward.1} parent=1 // loop_exit
      _
    %356 = vsyncpa [#allocation3], 1
    %s357 = scalar_lea.sflag [#allocation3], 1
    %358 = vsyncpa %s357, 1
    %359 = vsyncpa [#allocation5], 1

</llo_original>
